<compile_context>
chip_gen: v7x
topology: tpu7x:2x2x1
jax: 0.10.0
libtpu: 0.0.40
codegen_flags: <defaults>
</compile_context>

<pallas_src>
import numpy as np
import jax
import jax.numpy as jnp
from jax.experimental import pallas as pl
from jax.experimental.pallas import tpu as pltpu


# ----------------------------- Pallas kernels ------------------------------ #

def _argmax_mask_kernel(sl_ref, el_ref, am_ref, sp_ref, ep_ref):
    # sl_ref / el_ref : (BB, C, S) float logits, S on lanes / C on sublanes
    # am_ref          : (BB, S)    int32 attention mask
    # sp_ref / ep_ref : (BB, S)    int32 outputs (argmax, masked-fill 0)
    C = sl_ref.shape[1]

    def lane_argmax(x):                                  # x: (BB, C, S)
        # Unrolled running max / running argmax over the (small) class axis.
        # Strict '>' keeps the FIRST maximal index (np/torch tie-breaking).
        best_val = x[:, 0, :]                            # (BB, S)
        best_idx = jnp.zeros(best_val.shape, jnp.int32)
        for c in range(1, C):
            v = x[:, c, :]
            gt = v > best_val
            best_val = jnp.where(gt, v, best_val)
            best_idx = jnp.where(gt, c, best_idx)
        return best_idx                                  # (BB, S) int32

    keep = am_ref[...] != 0                              # (BB, S) bool
    sp_ref[...] = jnp.where(keep, lane_argmax(sl_ref[...]), 0).astype(jnp.int32)
    ep_ref[...] = jnp.where(keep, lane_argmax(el_ref[...]), 0).astype(jnp.int32)


def _span_match_kernel(sp_ref, ep_ref, match_ref):
    # sp_ref    : (1, 1, S)   start predictions, sp[i] lane-dense
    # ep_ref    : (1, TJ, 1)  end-prediction chunk for this j tile (sublanes)
    # match_ref : (1, 1, S)   resident across the j grid axis; used as the
    #                         running-min accumulator (sentinel = S); finalized
    #                         to "first j >= i with ep[j] == sp[i]" else -1.
    S = sp_ref.shape[-1]
    TJ = ep_ref.shape[1]
    jt = pl.program_id(1)

    @pl.when(jt == 0)
    def _init():
        match_ref[...] = jnp.full(match_ref.shape, S, dtype=match_ref.dtype)

    sp = sp_ref[0]                                       # (1, S)
    ep = ep_ref[0]                                       # (TJ, 1)
    SPm = jnp.broadcast_to(sp, (TJ, S))                  # SPm[j, i] = sp[i]
    EPm = jnp.broadcast_to(ep, (TJ, S))                  # EPm[j, i] = ep[j]
    j_idx = jax.lax.broadcasted_iota(jnp.int32, (TJ, S), 0) + jt * TJ
    i_idx = jax.lax.broadcasted_iota(jnp.int32, (TJ, S), 1)
    valid = (SPm == EPm) & (j_idx >= i_idx) & (SPm != 0)
    # Out-of-range (padded) j rows always yield candidates >= S, so partial
    # last tiles are automatically harmless.
    cand = jnp.where(valid, j_idx, S)
    tile_min = jnp.min(cand, axis=0, keepdims=True)      # (1, S)
    match_ref[0] = jnp.minimum(match_ref[0], tile_min)

    @pl.when(jt == pl.num_programs(1) - 1)
    def _finalize():
        fm = match_ref[...]
        match_ref[...] = jnp.where(fm < S, fm, -1).astype(match_ref.dtype)


# ------------------------------ Wrappers ----------------------------------- #

def _masked_argmax(start_logits, end_logits, attention_mask, *, batch_block=8):
    B, S, C = start_logits.shape
    BB = min(batch_block, B)
    # Put S on lanes, C on sublanes (perf: ~25x better lane utilization).
    sl_t = jnp.transpose(start_logits, (0, 2, 1))        # (B, C, S)
    el_t = jnp.transpose(end_logits, (0, 2, 1))          # (B, C, S)
    am = attention_mask.astype(jnp.int32).reshape(B, S)
    sp, ep = pl.pallas_call(
        _argmax_mask_kernel,
        out_shape=(jax.ShapeDtypeStruct((B, S), jnp.int32),
                   jax.ShapeDtypeStruct((B, S), jnp.int32)),
        grid_spec=pltpu.PrefetchScalarGridSpec(
            num_scalar_prefetch=0, grid=(pl.cdiv(B, BB),),
            in_specs=[pl.BlockSpec((BB, C, S), lambda b: (b, 0, 0)),
                      pl.BlockSpec((BB, C, S), lambda b: (b, 0, 0)),
                      pl.BlockSpec((BB, S), lambda b: (b, 0))],
            out_specs=[pl.BlockSpec((BB, S), lambda b: (b, 0)),
                       pl.BlockSpec((BB, S), lambda b: (b, 0))]),
        compiler_params=pltpu.CompilerParams(dimension_semantics=("parallel",)),
    )(sl_t, el_t, am)
    return sp, ep


def _choose_j_tile(S, tj=256, budget_bytes=12 * 1024 * 1024):
    # ~8 live int32 (TJ, S) temporaries per step -> keep 32*TJ*S under budget.
    tj = min(tj, S)
    while tj > 8 and 32 * tj * S > budget_bytes:
        tj //= 2
    return tj


def _span_match(start_pred, end_pred):
    # start_pred, end_pred : int32 [B, S]
    B, S = start_pred.shape
    tj = _choose_j_tile(S)
    nj = pl.cdiv(S, tj)
    sp3 = start_pred.astype(jnp.int32).reshape(B, 1, S)   # lane-dense
    ep_col = end_pred.astype(jnp.int32).reshape(B, S, 1)  # j on sublanes

    params = {"dimension_semantics": ("parallel", "arbitrary")}
    # Raise the scoped VMEM limit only when the compare tiles are large
    # (keeps small cases on safe defaults; 40 MiB fits every chip generation).
    if 32 * tj * S > 6 * 1024 * 1024:
        params["vmem_limit_bytes"] = 40 * 1024 * 1024

    match = pl.pallas_call(
        _span_match_kernel,
        out_shape=jax.ShapeDtypeStruct((B, 1, S), jnp.int32),
        grid_spec=pltpu.PrefetchScalarGridSpec(
            num_scalar_prefetch=0, grid=(B, nj),
            in_specs=[pl.BlockSpec((1, 1, S), lambda b, j: (b, 0, 0)),
                      pl.BlockSpec((1, tj, 1), lambda b, j: (b, j, 0))],
            out_specs=pl.BlockSpec((1, 1, S), lambda b, j: (b, 0, 0))),
        compiler_params=pltpu.CompilerParams(**params),
    )(sp3, ep_col)
    return match.reshape(B, S)


def _extract_spans(start_pred_np, match_np):
    # host-side glue: build the ragged list of (label, start, end) tuples
    results = []
    for sp_row, m_row in zip(start_pred_np, match_np):
        ex = []
        for i, (lbl, j) in enumerate(zip(sp_row, m_row)):
            if lbl != 0 and j >= 0:
                ex.append((int(lbl), int(i), int(j)))
        results.append(ex)
    return results


def span_postprocess(outputs, labels=None, attention_mask=None):
    """JAX/Pallas equivalent of SpanPostProcess.forward."""
    start_logits, end_logits = outputs
    sp, ep = _masked_argmax(start_logits, end_logits, attention_mask)

    if labels is not None:
        sl = jnp.asarray(labels[0], dtype=jnp.int32)
        el = jnp.asarray(labels[1], dtype=jnp.int32)
        # Fuse prediction + label span matching into a single pallas_call by
        # concatenating along the batch axis (one dispatch, one host sync).
        sp_all = jnp.concatenate([sp, sl], axis=0)
        ep_all = jnp.concatenate([ep, el], axis=0)
        match_all = _span_match(sp_all, ep_all)
        jax.block_until_ready(match_all)
        sp_np, m_np = jax.device_get((sp_all, match_all))
        B = sp.shape[0]
        results = _extract_spans(sp_np[:B], m_np[:B])
        new_labels = _extract_spans(sp_np[B:], m_np[B:])
        return results, new_labels

    match = _span_match(sp, ep)
    jax.block_until_ready(match)
    sp_np, m_np = jax.device_get((sp, match))
    return _extract_spans(sp_np, m_np)


# --------------------------- Pure-numpy reference --------------------------- #

def _ref_spans(start_pred, end_pred):
    results = []
    for sp_row, ep_row in zip(start_pred, end_pred):
        ex = []
        for start, sl in enumerate(sp_row):
            if sl == 0:
                continue
            for off, el in enumerate(ep_row[start:]):
                if sl == el:
                    ex.append((int(sl), int(start), int(start + off)))
                    break
        results.append(ex)
    return results


def _ref_forward(start_logits, end_logits, attention_mask, labels=None):
    keep = attention_mask.astype(bool)
    sp = np.argmax(start_logits, axis=-1)
    ep = np.argmax(end_logits, axis=-1)
    sp = np.where(keep, sp, 0)
    ep = np.where(keep, ep, 0)
    results = _ref_spans(sp, ep)
    if labels is not None:
        return results, _ref_spans(labels[0], labels[1])
    return results


# ---------------------------------- Main ------------------------------------ #

if __name__ == "__main__":
    B, S, C = 2, 8, 5
    key = jax.random.PRNGKey(0)
    k1, k2, k3, k4 = jax.random.split(key, 4)

    start_logits = jax.random.normal(k1, (B, S, C), dtype=jnp.float32)
    end_logits = jax.random.normal(k2, (B, S, C), dtype=jnp.float32)
    attention_mask = jnp.array([[1] * S,
                                [1] * (S - 3) + [0] * 3], dtype=jnp.int32)
    start_labels = jax.random.randint(k3, (B, S), 0, C, dtype=jnp.int32)
    end_labels = jax.random.randint(k4, (B, S), 0, C, dtype=jnp.int32)
    labels = (start_labels, end_labels)

    results, new_labels = span_postprocess(
        (start_logits, end_logits), labels=labels, attention_mask=attention_mask)

    ref_results, ref_labels = _ref_forward(
        np.asarray(start_logits), np.asarray(end_logits),
        np.asarray(attention_mask),
        labels=(np.asarray(start_labels), np.asarray(end_labels)))

    assert results == ref_results, (results, ref_results)
    assert new_labels == ref_labels, (new_labels, ref_labels)
    print("KERNEL_OK")
</pallas_src>

<mosaic_0001>
module attributes {stable_mosaic.version = 11 : i64} {
  func.func @_argmax_mask_kernel(%arg0: i32, %arg1: memref<2x5x8xf32, #tpu.memory_space<vmem>>, %arg2: memref<2x5x8xf32, #tpu.memory_space<vmem>>, %arg3: memref<2x8xi32, #tpu.memory_space<vmem>>, %arg4: memref<2x8xi32, #tpu.memory_space<vmem>>, %arg5: memref<2x8xi32, #tpu.memory_space<vmem>>) attributes {dimension_semantics = [#tpu.dimension_semantics<parallel>], iteration_bounds = array<i64: 1>, scalar_prefetch = 0 : i64, scratch_operands = 0 : i64, tpu.core_type = #tpu.core_type<tc>, window_params = [{transform_indices = @transform_0, window_bounds = array<i64: 2, 5, 8>}, {transform_indices = @transform_1, window_bounds = array<i64: 2, 5, 8>}, {transform_indices = @transform_2, window_bounds = array<i64: 2, 8>}, {transform_indices = @transform_3, window_bounds = array<i64: 2, 8>}, {transform_indices = @transform_4, window_bounds = array<i64: 2, 8>}]} {
    %c0 = arith.constant 0 : index
    %c0_0 = arith.constant 0 : index
    %0 = vector.load %arg3[%c0, %c0_0] : memref<2x8xi32, #tpu.memory_space<vmem>>, vector<2x8xi32>
    %c0_i32 = arith.constant 0 : i32
    %1 = vector.broadcast %c0_i32 : i32 to vector<2x8xi32>
    %2 = arith.cmpi ne, %0, %1 : vector<2x8xi32>
    %c0_1 = arith.constant 0 : index
    %c0_2 = arith.constant 0 : index
    %c0_3 = arith.constant 0 : index
    %3 = vector.load %arg1[%c0_1, %c0_2, %c0_3] : memref<2x5x8xf32, #tpu.memory_space<vmem>>, vector<2x5x8xf32>
    %4 = vector.extract_strided_slice %3 {offsets = [0, 0, 0], sizes = [2, 1, 8], strides = [1, 1, 1]} : vector<2x5x8xf32> to vector<2x1x8xf32>
    %5 = vector.shape_cast %4 : vector<2x1x8xf32> to vector<2x8xf32>
    %c0_i32_4 = arith.constant 0 : i32
    %6 = vector.broadcast %c0_i32_4 : i32 to vector<2x8xi32>
    %7 = vector.extract_strided_slice %3 {offsets = [0, 1, 0], sizes = [2, 1, 8], strides = [1, 1, 1]} : vector<2x5x8xf32> to vector<2x1x8xf32>
    %8 = vector.shape_cast %7 : vector<2x1x8xf32> to vector<2x8xf32>
    %9 = arith.cmpf ogt, %8, %5 : vector<2x8xf32>
    %10 = arith.select %9, %8, %5 : vector<2x8xi1>, vector<2x8xf32>
    %c1_i32 = arith.constant 1 : i32
    %11 = vector.broadcast %c1_i32 : i32 to vector<2x8xi32>
    %12 = arith.select %9, %11, %6 : vector<2x8xi1>, vector<2x8xi32>
    %13 = vector.extract_strided_slice %3 {offsets = [0, 2, 0], sizes = [2, 1, 8], strides = [1, 1, 1]} : vector<2x5x8xf32> to vector<2x1x8xf32>
    %14 = vector.shape_cast %13 : vector<2x1x8xf32> to vector<2x8xf32>
    %15 = arith.cmpf ogt, %14, %10 : vector<2x8xf32>
    %16 = arith.select %15, %14, %10 : vector<2x8xi1>, vector<2x8xf32>
    %c2_i32 = arith.constant 2 : i32
    %17 = vector.broadcast %c2_i32 : i32 to vector<2x8xi32>
    %18 = arith.select %15, %17, %12 : vector<2x8xi1>, vector<2x8xi32>
    %19 = vector.extract_strided_slice %3 {offsets = [0, 3, 0], sizes = [2, 1, 8], strides = [1, 1, 1]} : vector<2x5x8xf32> to vector<2x1x8xf32>
    %20 = vector.shape_cast %19 : vector<2x1x8xf32> to vector<2x8xf32>
    %21 = arith.cmpf ogt, %20, %16 : vector<2x8xf32>
    %22 = arith.select %21, %20, %16 : vector<2x8xi1>, vector<2x8xf32>
    %c3_i32 = arith.constant 3 : i32
    %23 = vector.broadcast %c3_i32 : i32 to vector<2x8xi32>
    %24 = arith.select %21, %23, %18 : vector<2x8xi1>, vector<2x8xi32>
    %25 = vector.extract_strided_slice %3 {offsets = [0, 4, 0], sizes = [2, 1, 8], strides = [1, 1, 1]} : vector<2x5x8xf32> to vector<2x1x8xf32>
    %26 = vector.shape_cast %25 : vector<2x1x8xf32> to vector<2x8xf32>
    %27 = arith.cmpf ogt, %26, %22 : vector<2x8xf32>
    %c4_i32 = arith.constant 4 : i32
    %28 = vector.broadcast %c4_i32 : i32 to vector<2x8xi32>
    %29 = arith.select %27, %28, %24 : vector<2x8xi1>, vector<2x8xi32>
    %c0_i32_5 = arith.constant 0 : i32
    %30 = vector.broadcast %c0_i32_5 : i32 to vector<2x8xi32>
    %31 = arith.select %2, %29, %30 : vector<2x8xi1>, vector<2x8xi32>
    %c0_6 = arith.constant 0 : index
    %c0_7 = arith.constant 0 : index
    %32 = vector.load %arg4[%c0_6, %c0_7] : memref<2x8xi32, #tpu.memory_space<vmem>>, vector<2x8xi32>
    tpu.vector_store %arg4[%c0_6, %c0_7], %31 {strides = array<i32>} : memref<2x8xi32, #tpu.memory_space<vmem>>, vector<2x8xi32>,
    %c0_8 = arith.constant 0 : index
    %c0_9 = arith.constant 0 : index
    %c0_10 = arith.constant 0 : index
    %33 = vector.load %arg2[%c0_8, %c0_9, %c0_10] : memref<2x5x8xf32, #tpu.memory_space<vmem>>, vector<2x5x8xf32>
    %34 = vector.extract_strided_slice %33 {offsets = [0, 0, 0], sizes = [2, 1, 8], strides = [1, 1, 1]} : vector<2x5x8xf32> to vector<2x1x8xf32>
    %35 = vector.shape_cast %34 : vector<2x1x8xf32> to vector<2x8xf32>
    %c0_i32_11 = arith.constant 0 : i32
    %36 = vector.broadcast %c0_i32_11 : i32 to vector<2x8xi32>
    %37 = vector.extract_strided_slice %33 {offsets = [0, 1, 0], sizes = [2, 1, 8], strides = [1, 1, 1]} : vector<2x5x8xf32> to vector<2x1x8xf32>
    %38 = vector.shape_cast %37 : vector<2x1x8xf32> to vector<2x8xf32>
    %39 = arith.cmpf ogt, %38, %35 : vector<2x8xf32>
    %40 = arith.select %39, %38, %35 : vector<2x8xi1>, vector<2x8xf32>
    %c1_i32_12 = arith.constant 1 : i32
    %41 = vector.broadcast %c1_i32_12 : i32 to vector<2x8xi32>
    %42 = arith.select %39, %41, %36 : vector<2x8xi1>, vector<2x8xi32>
    %43 = vector.extract_strided_slice %33 {offsets = [0, 2, 0], sizes = [2, 1, 8], strides = [1, 1, 1]} : vector<2x5x8xf32> to vector<2x1x8xf32>
    %44 = vector.shape_cast %43 : vector<2x1x8xf32> to vector<2x8xf32>
    %45 = arith.cmpf ogt, %44, %40 : vector<2x8xf32>
    %46 = arith.select %45, %44, %40 : vector<2x8xi1>, vector<2x8xf32>
    %c2_i32_13 = arith.constant 2 : i32
    %47 = vector.broadcast %c2_i32_13 : i32 to vector<2x8xi32>
    %48 = arith.select %45, %47, %42 : vector<2x8xi1>, vector<2x8xi32>
    %49 = vector.extract_strided_slice %33 {offsets = [0, 3, 0], sizes = [2, 1, 8], strides = [1, 1, 1]} : vector<2x5x8xf32> to vector<2x1x8xf32>
    %50 = vector.shape_cast %49 : vector<2x1x8xf32> to vector<2x8xf32>
    %51 = arith.cmpf ogt, %50, %46 : vector<2x8xf32>
    %52 = arith.select %51, %50, %46 : vector<2x8xi1>, vector<2x8xf32>
    %c3_i32_14 = arith.constant 3 : i32
    %53 = vector.broadcast %c3_i32_14 : i32 to vector<2x8xi32>
    %54 = arith.select %51, %53, %48 : vector<2x8xi1>, vector<2x8xi32>
    %55 = vector.extract_strided_slice %33 {offsets = [0, 4, 0], sizes = [2, 1, 8], strides = [1, 1, 1]} : vector<2x5x8xf32> to vector<2x1x8xf32>
    %56 = vector.shape_cast %55 : vector<2x1x8xf32> to vector<2x8xf32>
    %57 = arith.cmpf ogt, %56, %52 : vector<2x8xf32>
    %c4_i32_15 = arith.constant 4 : i32
    %58 = vector.broadcast %c4_i32_15 : i32 to vector<2x8xi32>
    %59 = arith.select %57, %58, %54 : vector<2x8xi1>, vector<2x8xi32>
    %c0_i32_16 = arith.constant 0 : i32
    %60 = vector.broadcast %c0_i32_16 : i32 to vector<2x8xi32>
    %61 = arith.select %2, %59, %60 : vector<2x8xi1>, vector<2x8xi32>
    %c0_17 = arith.constant 0 : index
    %c0_18 = arith.constant 0 : index
    %62 = vector.load %arg5[%c0_17, %c0_18] : memref<2x8xi32, #tpu.memory_space<vmem>>, vector<2x8xi32>
    tpu.vector_store %arg5[%c0_17, %c0_18], %61 {strides = array<i32>} : memref<2x8xi32, #tpu.memory_space<vmem>>, vector<2x8xi32>,
    return
  }
  func.func @transform_0(%arg0: i32) -> (i32, i32, i32) {
    %c0_i32 = arith.constant 0 : i32
    %c0_i32_0 = arith.constant 0 : i32
    %c0_i32_1 = arith.constant 0 : i32
    return %arg0, %c0_i32, %c0_i32_0 : i32, i32, i32
  }
  func.func @transform_1(%arg0: i32) -> (i32, i32, i32) {
    %c0_i32 = arith.constant 0 : i32
    %c0_i32_0 = arith.constant 0 : i32
    %c0_i32_1 = arith.constant 0 : i32
    return %arg0, %c0_i32, %c0_i32_0 : i32, i32, i32
  }
  func.func @transform_2(%arg0: i32) -> (i32, i32) {
    %c0_i32 = arith.constant 0 : i32
    %c0_i32_0 = arith.constant 0 : i32
    return %arg0, %c0_i32 : i32, i32
  }
  func.func @transform_3(%arg0: i32) -> (i32, i32) {
    %c0_i32 = arith.constant 0 : i32
    %c0_i32_0 = arith.constant 0 : i32
    return %arg0, %c0_i32 : i32, i32
  }
  func.func @transform_4(%arg0: i32) -> (i32, i32) {
    %c0_i32 = arith.constant 0 : i32
    %c0_i32_0 = arith.constant 0 : i32
    return %arg0, %c0_i32 : i32, i32
  }
}

</mosaic_0001>

<llo_original>
// kernel: tpu_custom_call.1
$region0: #{tpu_custom_call.1}
  #allocation0 [shape = 'u32[]', space=smem, size = 0x4, offset = 0x4, fixed_abs, tag = 'smem constant byte address 0x4 - core index']
  #allocation1 [shape = 'u32[144,128]{1,0:T(1,128)}', space=vmem, size = 0x12000, scoped, tag = 'internal scratch']
  %s0 = inlined_call_operand.vmem [shape: f32[2,5,8], index: 0, kind: input, shape index: {}]
  %s1 = inlined_call_operand.vmem [shape: f32[2,5,8], index: 1, kind: input, shape index: {}]
  %s2 = inlined_call_operand.vmem [shape: s32[2,8], index: 2, kind: input, shape index: {}]
  %s3 = inlined_call_operand.hbm [shape: s32[2,8], index: 3, kind: output, shape index: {0}]
  %s4 = inlined_call_operand.hbm [shape: s32[2,8], index: 4, kind: output, shape index: {1}]
  %5 = xla_tuple %s3, %s4
  %s6 = sld [smem:[#allocation0]]
  $region30: #{tpu_custom_call.1} parent=0
    _
  %s8 = ssub.s32 1, %s6
  %s9 = scalar_select 0, %s8, %s6
  $region1: #{tpu_custom_call.1} parent=0
    #allocation2 [shape = 'u8[1024]{0}', space=vmem, size = 0x400, scoped, tag = 'output window, operand 0, single buffered']
    #allocation3 [shape = 's32[1]{0}', space=sflag, size = 0x4, scoped, tag = 'scoped memory for tpu_custom_call.1']
    #allocation4 [shape = 'u8[1024]{0}', space=vmem, size = 0x400, scoped, tag = 'output window, operand 1, single buffered']
    #allocation5 [shape = 's32[1]{0}', space=sflag, size = 0x4, scoped, tag = 'scoped memory for tpu_custom_call.1']
    %10 = vsyncpa [#allocation3], 0
    %11 = vsyncpa [#allocation5], 0
    // Predicated region
    $region2: #{tpu_custom_call.1} parent=1 // pred_check
      _
    $region3: #{tpu_custom_call.1} parent=1 // pred_check_branch
      %13 = sbr.rel (0) target = $region5
    $region4: #{tpu_custom_call.1} parent=1 // pred_region
      _
    $region5: #{tpu_custom_call.1} parent=1 // pred_fallthru
      _
    // Predicated region
    $region6: #{tpu_custom_call.1} parent=1 // pred_check
      _
    $region7: #{tpu_custom_call.1} parent=1 // pred_check_branch
      %15 = sbr.rel (0) target = $region9
    $region8: #{tpu_custom_call.1} parent=1 // pred_region
      _
    $region9: #{tpu_custom_call.1} parent=1 // pred_fallthru
      _
    // Predicated region
    $region10: #{tpu_custom_call.1} parent=1 // pred_check
      _
    $region11: #{tpu_custom_call.1} parent=1 // pred_check_branch
      %17 = sbr.rel (0) target = $region13
    $region12: #{tpu_custom_call.1} parent=1 // pred_region
      _
    $region13: #{tpu_custom_call.1} parent=1 // pred_fallthru
      _
    %v18 = vld [vmem:[%s2] sm:$0x3]
    %vm19 = vcmp.ne.s32.totalorder %v18, 0
    %v20 = vld [vmem:[%s0] sm:$0x1f]
    %v21 = vld [vmem:[%s0 + $0x8] sm:$0x1f]
    %v24 = vrot.slane %v20, 7
    %v25 = vrot.slane %v21, 7
    %vm28 = vcmp.gt.f32.partialorder %v20, %v24
    %vm29 = vcmp.gt.f32.partialorder %v21, %v25
    %v30 = vsel %vm28, %v20, %v24
    %v31 = vsel %vm29, %v21, %v25
    %v32 = vsel %vm28, 1, 0
    %v33 = vsel %vm29, 1, 0
    %v36 = vrot.slane %v30, 7
    %v37 = vrot.slane %v31, 7
    %vm40 = vcmp.gt.f32.partialorder %v20, %v36
    %vm41 = vcmp.gt.f32.partialorder %v21, %v37
    %v42 = vsel %vm40, %v20, %v36
    %v43 = vsel %vm41, %v21, %v37
    %v44 = vrot.slane %v32, 7
    %v45 = vrot.slane %v33, 7
    %v46 = vsel %vm40, 2, %v44
    %v47 = vsel %vm41, 2, %v45
    %v50 = vrot.slane %v42, 7
    %v51 = vrot.slane %v43, 7
    %vm54 = vcmp.gt.f32.partialorder %v20, %v50
    %vm55 = vcmp.gt.f32.partialorder %v21, %v51
    %v56 = vsel %vm54, %v20, %v50
    %v57 = vsel %vm55, %v21, %v51
    %v58 = vrot.slane %v46, 7
    %v59 = vrot.slane %v47, 7
    %v60 = vsel %vm54, 3, %v58
    %v61 = vsel %vm55, 3, %v59
    %v64 = vrot.slane %v56, 7
    %v65 = vrot.slane %v57, 7
    %vm68 = vcmp.gt.f32.partialorder %v20, %v64
    %vm69 = vcmp.gt.f32.partialorder %v21, %v65
    %v70 = vrot.slane %v60, 7
    %v71 = vrot.slane %v61, 7
    %v72 = vsel %vm68, 4, %v70
    %v73 = vsel %vm69, 4, %v71
    %v74 = vrot.slane %v72, 4
    %v75 = vrot.slane %v73, 3
    %vm76 = vcmask 1041409
    %v77 = vsel %vm76, %v75, %v74
    %v78 = vsel %vm19, %v77, 0
    %vm79 = vcmask 58368
    %80 = vst.msk [vmem:[#allocation2] sm:$0x3] %vm79, %v78
    %v81 = vld [vmem:[%s1] sm:$0x1f]
    %v82 = vld [vmem:[%s1 + $0x8] sm:$0x1f]
    %v85 = vrot.slane %v81, 7
    %v86 = vrot.slane %v82, 7
    %vm89 = vcmp.gt.f32.partialorder %v81, %v85
    %vm90 = vcmp.gt.f32.partialorder %v82, %v86
    %v91 = vsel %vm89, %v81, %v85
    %v92 = vsel %vm90, %v82, %v86
    %v93 = vsel %vm89, 1, 0
    %v94 = vsel %vm90, 1, 0
    %v97 = vrot.slane %v91, 7
    %v98 = vrot.slane %v92, 7
    %vm101 = vcmp.gt.f32.partialorder %v81, %v97
    %vm102 = vcmp.gt.f32.partialorder %v82, %v98
    %v103 = vsel %vm101, %v81, %v97
    %v104 = vsel %vm102, %v82, %v98
    %v105 = vrot.slane %v93, 7
    %v106 = vrot.slane %v94, 7
    %v107 = vsel %vm101, 2, %v105
    %v108 = vsel %vm102, 2, %v106
    %v111 = vrot.slane %v103, 7
    %v112 = vrot.slane %v104, 7
    %vm115 = vcmp.gt.f32.partialorder %v81, %v111
    %vm116 = vcmp.gt.f32.partialorder %v82, %v112
    %v117 = vsel %vm115, %v81, %v111
    %v118 = vsel %vm116, %v82, %v112
    %v119 = vrot.slane %v107, 7
    %v120 = vrot.slane %v108, 7
    %v121 = vsel %vm115, 3, %v119
    %v122 = vsel %vm116, 3, %v120
    %v125 = vrot.slane %v117, 7
    %v126 = vrot.slane %v118, 7
    %vm129 = vcmp.gt.f32.partialorder %v81, %v125
    %vm130 = vcmp.gt.f32.partialorder %v82, %v126
    %v131 = vrot.slane %v121, 7
    %v132 = vrot.slane %v122, 7
    %v133 = vsel %vm129, 4, %v131
    %v134 = vsel %vm130, 4, %v132
    %v135 = vrot.slane %v133, 4
    %v136 = vrot.slane %v134, 3
    %v137 = vsel %vm76, %v136, %v135
    %v138 = vsel %vm19, %v137, 0
    %139 = vst.msk [vmem:[#allocation4] sm:$0x3] %vm79, %v138
    // Predicated region
    $region14: #{tpu_custom_call.1} parent=1 // pred_check
      _
    $region15: #{tpu_custom_call.1} parent=1 // pred_check_branch
      %141 = sbr.rel (0) target = $region17
    $region16: #{tpu_custom_call.1} parent=1 // pred_region
      %s143 = ssub.s32 32, 32
      %144 = vsyncadd [#allocation3], %s143
      %s146 = sshll.u32 [#allocation2], 4
      %s147 = int_to_ptr.vmem [resolvable:$true] %s146
      %149 = dma.vmem_to_hbm [thread:$0]  %s147, 32, %s3, [#allocation3]
    $region17: #{tpu_custom_call.1} parent=1 // pred_fallthru
      _
    // Predicated region
    $region18: #{tpu_custom_call.1} parent=1 // pred_check
      _
    $region19: #{tpu_custom_call.1} parent=1 // pred_check_branch
      %151 = sbr.rel (0) target = $region21
    $region20: #{tpu_custom_call.1} parent=1 // pred_region
      %s153 = ssub.s32 32, 32
      %154 = vsyncadd [#allocation5], %s153
      %s156 = sshll.u32 [#allocation4], 4
      %s157 = int_to_ptr.vmem [resolvable:$true] %s156
      %159 = dma.vmem_to_hbm [thread:$0]  %s157, 32, %s4, [#allocation5]
    $region21: #{tpu_custom_call.1} parent=1 // pred_fallthru
      _
    // Predicated region
    $region22: #{tpu_custom_call.1} parent=1 // pred_check
      _
    $region23: #{tpu_custom_call.1} parent=1 // pred_check_branch
      %161 = sbr.rel (0) target = $region25
    $region24: #{tpu_custom_call.1} parent=1 // pred_region
      %162 = dma.done [#allocation3], 32
    $region25: #{tpu_custom_call.1} parent=1 // pred_fallthru
      _
    // Predicated region
    $region26: #{tpu_custom_call.1} parent=1 // pred_check
      _
    $region27: #{tpu_custom_call.1} parent=1 // pred_check_branch
      %164 = sbr.rel (0) target = $region29
    $region28: #{tpu_custom_call.1} parent=1 // pred_region
      %165 = dma.done [#allocation5], 32
    $region29: #{tpu_custom_call.1} parent=1 // pred_fallthru
      _
    %166 = vsyncpa [#allocation3], 1
    %167 = vsyncpa [#allocation5], 1

</llo_original>
